<compile_context>
chip_gen: v6e
topology: v6e:2x2x1
jax: 0.10.0
libtpu: 0.0.40
codegen_flags: <defaults>
</compile_context>

<pallas_src>
import numpy as np
import jax
import jax.numpy as jnp
from jax.experimental import pallas as pl
from jax.experimental.pallas import tpu as pltpu

EPS = 0.003
H1, H2, H3 = 256, 128, 64
LANE = 128


def _round_up(x, m):
    return ((x + m - 1) // m) * m


def _cdiv(a, b):
    return -(-a // b)


def _default_elementwise_dtype():
    """bf16 elementwise on v6e/v7x (bf16 VALU); f32 on v5e / unknown."""
    try:
        kind = jax.devices()[0].device_kind.lower()
    except Exception:
        return jnp.float32
    if "v6" in kind or "v7" in kind:
        return jnp.bfloat16
    return jnp.float32


# ----------------------------------------------------------------------------
# Kernel
# ----------------------------------------------------------------------------
def _make_actor_kernel(edt):
    """edt: dtype for bias-add / ReLU intermediates (bf16 on v6e/v7x, f32 on v5e)."""

    def kernel(x_ref, w1_ref, b1_ref, w2_ref, b2_ref,
               w3_ref, b3_ref, w4_ref, b4_ref, lim_ref, out_ref):
        # fc1 + ReLU   (bf16 MXU operands, f32 accumulation inside the dot)
        h = jnp.dot(x_ref[...], w1_ref[...], preferred_element_type=jnp.float32)
        h = jnp.maximum(h.astype(edt) + b1_ref[...], 0).astype(jnp.bfloat16)
        # fc2 + ReLU
        h = jnp.dot(h, w2_ref[...], preferred_element_type=jnp.float32)
        h = jnp.maximum(h.astype(edt) + b2_ref[...], 0).astype(jnp.bfloat16)
        # fc3 + ReLU   (out dim zero-padded 64 -> 128: stays lane-dense)
        h = jnp.dot(h, w3_ref[...], preferred_element_type=jnp.float32)
        h = jnp.maximum(h.astype(edt) + b3_ref[...], 0).astype(jnp.bfloat16)
        # fc4 + tanh (f32 for accuracy), scaled by the SMEM action_lim scalar
        a = (jnp.dot(h, w4_ref[...], preferred_element_type=jnp.float32)
             + b4_ref[...].astype(jnp.float32))
        out_ref[...] = (jnp.tanh(a) * lim_ref[0, 0]).astype(out_ref.dtype)

    return kernel


# ----------------------------------------------------------------------------
# Parameter prep: cast weights to bf16, biases to the elementwise dtype, and
# zero-pad narrow minor dims to 128 lanes (mathematically exact).
# ----------------------------------------------------------------------------
def prepare_actor_params(params, elementwise_dtype=None):
    edt = elementwise_dtype or _default_elementwise_dtype()
    action_dim = params["w4"].shape[1]
    ap = _round_up(action_dim, LANE)
    prepped = {
        "w1": params["w1"].astype(jnp.bfloat16),
        "b1": params["b1"].astype(edt),
        "w2": params["w2"].astype(jnp.bfloat16),
        "b2": params["b2"].astype(edt),
        "w3": jnp.pad(params["w3"], ((0, 0), (0, LANE - H3))).astype(jnp.bfloat16),
        "b3": jnp.pad(params["b3"], ((0, 0), (0, LANE - H3))).astype(edt),
        "w4": jnp.pad(params["w4"],
                      ((0, LANE - H3), (0, ap - action_dim))).astype(jnp.bfloat16),
        "b4": jnp.pad(params["b4"],
                      ((0, 0), (0, ap - action_dim))).astype(edt),
    }
    return prepped, action_dim


def _choose_tile(n, tile_b):
    """Pick a batch tile: multiple of 16, capped for tiny batches, and split so
    the grid has >= 2 steps for mid/large batches (v7x second TC)."""
    n16 = _round_up(max(n, 1), 16)
    tb = _round_up(min(int(tile_b), n16), 16)
    if n16 >= 32 and _cdiv(n16, tb) < 2:
        tb = _round_up(_cdiv(n16, 2), 16)
    n_pad = _round_up(n16, tb)
    return tb, n_pad


def _vmem_limit_bytes(tile_b, state_dim, ap, weight_bytes):
    in_bytes = tile_b * state_dim * 2            # bf16 input tile
    out_bytes = tile_b * ap * 2                  # bf16 output tile
    act_bytes = tile_b * (H1 + H2 + LANE + LANE) * 4   # worst-case f32 intermediates
    total = 2 * (in_bytes + out_bytes + weight_bytes) + act_bytes
    total = int(total * 2)                       # 2x safety margin
    return min(max(total, 4 * 1024 * 1024), 32 * 1024 * 1024)


# ----------------------------------------------------------------------------
# Forward pass.  Returns the PADDED bf16 output [n_pad, round_up(action_dim,128)]
# so the hot path carries no extra slice-copy; use trim_action() if you need
# the exact [n, action_dim] f32 view (e.g. for verification).
# ----------------------------------------------------------------------------
def actor_forward(state, padded_params, action_lim, tile_b=1024):
    n, state_dim = state.shape
    p = padded_params
    ap = p["w4"].shape[1]
    edt = p["b1"].dtype

    tile_b, n_pad = _choose_tile(n, tile_b)

    x = state.astype(jnp.bfloat16)
    if n_pad != n:
        x = jnp.pad(x, ((0, n_pad - n), (0, 0)))

    lim = jnp.full((1, 1), action_lim, jnp.float32)

    def resident(a):  # weights/biases: same block for every grid step
        return pl.BlockSpec(a.shape, lambda i: (0,) * a.ndim)

    weight_keys = ("w1", "b1", "w2", "b2", "w3", "b3", "w4", "b4")
    weight_bytes = sum(int(np.prod(p[k].shape)) * p[k].dtype.itemsize
                       for k in weight_keys)
    flops = 2 * n_pad * (state_dim * H1 + H1 * H2 + H2 * LANE + LANE * ap)
    bytes_accessed = x.size * 2 + n_pad * ap * 2 + weight_bytes

    out = pl.pallas_call(
        _make_actor_kernel(edt),
        out_shape=jax.ShapeDtypeStruct((n_pad, ap), jnp.bfloat16),
        grid=(n_pad // tile_b,),
        in_specs=[
            pl.BlockSpec((tile_b, state_dim), lambda i: (i, 0)),
            resident(p["w1"]), resident(p["b1"]),
            resident(p["w2"]), resident(p["b2"]),
            resident(p["w3"]), resident(p["b3"]),
            resident(p["w4"]), resident(p["b4"]),
            pl.BlockSpec((1, 1), lambda i: (0, 0), memory_space=pltpu.SMEM),
        ],
        out_specs=pl.BlockSpec((tile_b, ap), lambda i: (i, 0)),
        compiler_params=pltpu.CompilerParams(
            dimension_semantics=("parallel",),
            vmem_limit_bytes=_vmem_limit_bytes(tile_b, state_dim, ap, weight_bytes)),
        cost_estimate=pl.CostEstimate(
            flops=flops, transcendentals=n_pad * ap,
            bytes_accessed=bytes_accessed),
    )(x, p["w1"], p["b1"], p["w2"], p["b2"], p["w3"], p["b3"],
      p["w4"], p["b4"], lim)

    return out  # padded [n_pad, ap] bf16


def trim_action(out_padded, n, action_dim, dtype=jnp.float32):
    """Verification / consumer helper: narrow to [n, action_dim]."""
    return out_padded[:n, :action_dim].astype(dtype)


# ----------------------------------------------------------------------------
# Deterministic parameter init mirroring the PyTorch __init__:
#   fc1..fc3 weights: fanin_init -> U(-1/sqrt(fan_in), 1/sqrt(fan_in))
#   fc4 weight:       U(-EPS, EPS)
#   all biases:       nn.Linear default U(-1/sqrt(fan_in), 1/sqrt(fan_in))
# Weights stored as [in, out] (transpose of torch's [out, in]).
# ----------------------------------------------------------------------------
def init_actor_params(key, state_dim, action_dim):
    keys = jax.random.split(key, 8)

    def uniform(k, shape, bound):
        return jax.random.uniform(k, shape, jnp.float32, -bound, bound)

    dims = [(state_dim, H1), (H1, H2), (H2, H3), (H3, action_dim)]
    params = {}
    for i, (fin, fout) in enumerate(dims, start=1):
        w_bound = EPS if i == 4 else 1.0 / np.sqrt(fin)
        b_bound = 1.0 / np.sqrt(fin)
        params[f"w{i}"] = uniform(keys[2 * (i - 1)], (fin, fout), w_bound)
        params[f"b{i}"] = uniform(keys[2 * (i - 1) + 1], (1, fout), b_bound)
    return params


def actor_reference(state, params, action_lim):
    h = jnp.maximum(state @ params["w1"] + params["b1"], 0.0)
    h = jnp.maximum(h @ params["w2"] + params["b2"], 0.0)
    h = jnp.maximum(h @ params["w3"] + params["b3"], 0.0)
    return jnp.tanh(h @ params["w4"] + params["b4"]) * jnp.float32(action_lim)


if __name__ == "__main__":
    key = jax.random.PRNGKey(0)
    k_params, k_state = jax.random.split(key)

    batch = 8
    state_dim = 32
    action_dim = 8
    action_lim = 2.0

    params = init_actor_params(k_params, state_dim, action_dim)
    padded_params, adim = prepare_actor_params(params)
    state = jax.random.normal(k_state, (batch, state_dim), jnp.float32)

    out_padded = actor_forward(state, padded_params, action_lim)
    out_padded = jax.block_until_ready(out_padded)

    # Verification-only trim (not part of the hot path).
    out = trim_action(out_padded, batch, adim)

    ref = actor_reference(state, params, action_lim)
    # bf16 MXU operands / bf16 output with f32 accumulation -> relaxed tolerance.
    np.testing.assert_allclose(np.asarray(out), np.asarray(ref),
                               rtol=5e-2, atol=5e-2)
    assert out.shape == (batch, action_dim)

    print("KERNEL_OK")
</pallas_src>

<mosaic_0001>
module attributes {stable_mosaic.version = 11 : i64} {
  func.func @kernel(%arg0: i32, %arg1: memref<16x32xbf16, #tpu.memory_space<vmem>>, %arg2: memref<32x256xbf16, #tpu.memory_space<vmem>>, %arg3: memref<1x256xf32, #tpu.memory_space<vmem>>, %arg4: memref<256x128xbf16, #tpu.memory_space<vmem>>, %arg5: memref<1x128xf32, #tpu.memory_space<vmem>>, %arg6: memref<128x128xbf16, #tpu.memory_space<vmem>>, %arg7: memref<1x128xf32, #tpu.memory_space<vmem>>, %arg8: memref<128x128xbf16, #tpu.memory_space<vmem>>, %arg9: memref<1x128xf32, #tpu.memory_space<vmem>>, %arg10: memref<1x1xf32, #tpu.memory_space<smem>>, %arg11: memref<16x128xbf16, #tpu.memory_space<vmem>>) attributes {dimension_semantics = [#tpu.dimension_semantics<parallel>], iteration_bounds = array<i64: 1>, scalar_prefetch = 0 : i64, scratch_operands = 0 : i64, tpu.core_type = #tpu.core_type<tc>, window_params = [{transform_indices = @transform_0, window_bounds = array<i64: 16, 32>}, {pipeline_mode = #tpu.pipeline_mode<synchronous>, transform_indices = @transform_1, window_bounds = array<i64: 32, 256>}, {pipeline_mode = #tpu.pipeline_mode<synchronous>, transform_indices = @transform_2, window_bounds = array<i64: 1, 256>}, {pipeline_mode = #tpu.pipeline_mode<synchronous>, transform_indices = @transform_3, window_bounds = array<i64: 256, 128>}, {pipeline_mode = #tpu.pipeline_mode<synchronous>, transform_indices = @transform_4, window_bounds = array<i64: 1, 128>}, {pipeline_mode = #tpu.pipeline_mode<synchronous>, transform_indices = @transform_5, window_bounds = array<i64: 128, 128>}, {pipeline_mode = #tpu.pipeline_mode<synchronous>, transform_indices = @transform_6, window_bounds = array<i64: 1, 128>}, {pipeline_mode = #tpu.pipeline_mode<synchronous>, transform_indices = @transform_7, window_bounds = array<i64: 128, 128>}, {pipeline_mode = #tpu.pipeline_mode<synchronous>, transform_indices = @transform_8, window_bounds = array<i64: 1, 128>}, {transform_indices = @transform_9, window_bounds = array<i64: 1, 1>}, {transform_indices = @transform_10, window_bounds = array<i64: 16, 128>}]} {
    %c0 = arith.constant 0 : index
    %c0_0 = arith.constant 0 : index
    %0 = vector.load %arg1[%c0, %c0_0] : memref<16x32xbf16, #tpu.memory_space<vmem>>, vector<16x32xbf16>
    %c0_1 = arith.constant 0 : index
    %c0_2 = arith.constant 0 : index
    %1 = vector.load %arg2[%c0_1, %c0_2] : memref<32x256xbf16, #tpu.memory_space<vmem>>, vector<32x256xbf16>
    %cst = arith.constant dense<0.000000e+00> : vector<16x256xf32>
    %2 = tpu.matmul %0, %1, %cst {dimension_numbers = #tpu.dot_dimension_numbers<[1], [0], [0], [1], [0, 0, 1, 1], [], []>} : vector<16x32xbf16>, vector<32x256xbf16>, vector<16x256xf32> -> vector<16x256xf32>
    %c0_3 = arith.constant 0 : index
    %c0_4 = arith.constant 0 : index
    %3 = vector.load %arg3[%c0_3, %c0_4] : memref<1x256xf32, #tpu.memory_space<vmem>>, vector<1x256xf32>
    %4 = vector.broadcast %3 : vector<1x256xf32> to vector<16x256xf32>
    %5 = arith.addf %2, %4 : vector<16x256xf32>
    %cst_5 = arith.constant 0.000000e+00 : f32
    %6 = vector.broadcast %cst_5 : f32 to vector<16x256xf32>
    %7 = arith.maximumf %5, %6 : vector<16x256xf32>
    %8 = arith.truncf %7 : vector<16x256xf32> to vector<16x256xbf16>
    %c0_6 = arith.constant 0 : index
    %c0_7 = arith.constant 0 : index
    %9 = vector.load %arg4[%c0_6, %c0_7] : memref<256x128xbf16, #tpu.memory_space<vmem>>, vector<256x128xbf16>
    %cst_8 = arith.constant dense<0.000000e+00> : vector<16x128xf32>
    %10 = tpu.matmul %8, %9, %cst_8 {dimension_numbers = #tpu.dot_dimension_numbers<[1], [0], [0], [1], [0, 0, 1, 1], [], []>} : vector<16x256xbf16>, vector<256x128xbf16>, vector<16x128xf32> -> vector<16x128xf32>
    %c0_9 = arith.constant 0 : index
    %c0_10 = arith.constant 0 : index
    %11 = vector.load %arg5[%c0_9, %c0_10] : memref<1x128xf32, #tpu.memory_space<vmem>>, vector<1x128xf32>
    %12 = vector.broadcast %11 : vector<1x128xf32> to vector<16x128xf32>
    %13 = arith.addf %10, %12 : vector<16x128xf32>
    %cst_11 = arith.constant 0.000000e+00 : f32
    %14 = vector.broadcast %cst_11 : f32 to vector<16x128xf32>
    %15 = arith.maximumf %13, %14 : vector<16x128xf32>
    %16 = arith.truncf %15 : vector<16x128xf32> to vector<16x128xbf16>
    %c0_12 = arith.constant 0 : index
    %c0_13 = arith.constant 0 : index
    %17 = vector.load %arg6[%c0_12, %c0_13] : memref<128x128xbf16, #tpu.memory_space<vmem>>, vector<128x128xbf16>
    %cst_14 = arith.constant dense<0.000000e+00> : vector<16x128xf32>
    %18 = tpu.matmul %16, %17, %cst_14 {dimension_numbers = #tpu.dot_dimension_numbers<[1], [0], [0], [1], [0, 0, 1, 1], [], []>} : vector<16x128xbf16>, vector<128x128xbf16>, vector<16x128xf32> -> vector<16x128xf32>
    %c0_15 = arith.constant 0 : index
    %c0_16 = arith.constant 0 : index
    %19 = vector.load %arg7[%c0_15, %c0_16] : memref<1x128xf32, #tpu.memory_space<vmem>>, vector<1x128xf32>
    %20 = vector.broadcast %19 : vector<1x128xf32> to vector<16x128xf32>
    %21 = arith.addf %18, %20 : vector<16x128xf32>
    %cst_17 = arith.constant 0.000000e+00 : f32
    %22 = vector.broadcast %cst_17 : f32 to vector<16x128xf32>
    %23 = arith.maximumf %21, %22 : vector<16x128xf32>
    %24 = arith.truncf %23 : vector<16x128xf32> to vector<16x128xbf16>
    %c0_18 = arith.constant 0 : index
    %c0_19 = arith.constant 0 : index
    %25 = vector.load %arg8[%c0_18, %c0_19] : memref<128x128xbf16, #tpu.memory_space<vmem>>, vector<128x128xbf16>
    %cst_20 = arith.constant dense<0.000000e+00> : vector<16x128xf32>
    %26 = tpu.matmul %24, %25, %cst_20 {dimension_numbers = #tpu.dot_dimension_numbers<[1], [0], [0], [1], [0, 0, 1, 1], [], []>} : vector<16x128xbf16>, vector<128x128xbf16>, vector<16x128xf32> -> vector<16x128xf32>
    %c0_21 = arith.constant 0 : index
    %c0_22 = arith.constant 0 : index
    %27 = vector.load %arg9[%c0_21, %c0_22] : memref<1x128xf32, #tpu.memory_space<vmem>>, vector<1x128xf32>
    %28 = vector.broadcast %27 : vector<1x128xf32> to vector<16x128xf32>
    %29 = arith.addf %26, %28 : vector<16x128xf32>
    %30 = math.tanh %29 : vector<16x128xf32>
    %c0_23 = arith.constant 0 : index
    %c0_24 = arith.constant 0 : index
    %31 = memref.load %arg10[%c0_23, %c0_24] : memref<1x1xf32, #tpu.memory_space<smem>>
    %32 = vector.broadcast %31 : f32 to vector<16x128xf32>
    %33 = arith.mulf %30, %32 : vector<16x128xf32>
    %34 = arith.truncf %33 : vector<16x128xf32> to vector<16x128xbf16>
    %c0_25 = arith.constant 0 : index
    %c0_26 = arith.constant 0 : index
    %35 = vector.load %arg11[%c0_25, %c0_26] : memref<16x128xbf16, #tpu.memory_space<vmem>>, vector<16x128xbf16>
    tpu.vector_store %arg11[%c0_25, %c0_26], %34 {strides = array<i32>} : memref<16x128xbf16, #tpu.memory_space<vmem>>, vector<16x128xbf16>,
    return
  }
  func.func @transform_0(%arg0: i32) -> (i32, i32) {
    %c0_i32 = arith.constant 0 : i32
    %c0_i32_0 = arith.constant 0 : i32
    return %arg0, %c0_i32 : i32, i32
  }
  func.func @transform_1(%arg0: i32) -> (i32, i32) {
    %c0_i32 = arith.constant 0 : i32
    %c0_i32_0 = arith.constant 0 : i32
    %c0_i32_1 = arith.constant 0 : i32
    return %c0_i32, %c0_i32_0 : i32, i32
  }
  func.func @transform_2(%arg0: i32) -> (i32, i32) {
    %c0_i32 = arith.constant 0 : i32
    %c0_i32_0 = arith.constant 0 : i32
    %c0_i32_1 = arith.constant 0 : i32
    return %c0_i32, %c0_i32_0 : i32, i32
  }
  func.func @transform_3(%arg0: i32) -> (i32, i32) {
    %c0_i32 = arith.constant 0 : i32
    %c0_i32_0 = arith.constant 0 : i32
    %c0_i32_1 = arith.constant 0 : i32
    return %c0_i32, %c0_i32_0 : i32, i32
  }
  func.func @transform_4(%arg0: i32) -> (i32, i32) {
    %c0_i32 = arith.constant 0 : i32
    %c0_i32_0 = arith.constant 0 : i32
    %c0_i32_1 = arith.constant 0 : i32
    return %c0_i32, %c0_i32_0 : i32, i32
  }
  func.func @transform_5(%arg0: i32) -> (i32, i32) {
    %c0_i32 = arith.constant 0 : i32
    %c0_i32_0 = arith.constant 0 : i32
    %c0_i32_1 = arith.constant 0 : i32
    return %c0_i32, %c0_i32_0 : i32, i32
  }
  func.func @transform_6(%arg0: i32) -> (i32, i32) {
    %c0_i32 = arith.constant 0 : i32
    %c0_i32_0 = arith.constant 0 : i32
    %c0_i32_1 = arith.constant 0 : i32
    return %c0_i32, %c0_i32_0 : i32, i32
  }
  func.func @transform_7(%arg0: i32) -> (i32, i32) {
    %c0_i32 = arith.constant 0 : i32
    %c0_i32_0 = arith.constant 0 : i32
    %c0_i32_1 = arith.constant 0 : i32
    return %c0_i32, %c0_i32_0 : i32, i32
  }
  func.func @transform_8(%arg0: i32) -> (i32, i32) {
    %c0_i32 = arith.constant 0 : i32
    %c0_i32_0 = arith.constant 0 : i32
    %c0_i32_1 = arith.constant 0 : i32
    return %c0_i32, %c0_i32_0 : i32, i32
  }
  func.func @transform_9(%arg0: i32) -> (i32, i32) {
    %c0_i32 = arith.constant 0 : i32
    %c0_i32_0 = arith.constant 0 : i32
    %c0_i32_1 = arith.constant 0 : i32
    return %c0_i32, %c0_i32_0 : i32, i32
  }
  func.func @transform_10(%arg0: i32) -> (i32, i32) {
    %c0_i32 = arith.constant 0 : i32
    %c0_i32_0 = arith.constant 0 : i32
    return %arg0, %c0_i32 : i32, i32
  }
}

</mosaic_0001>

<llo_original>
// kernel: tpu_custom_call.1
$region0: #{tpu_custom_call.1}
  #allocation0 [shape = 'u32[]', space=smem, size = 0x4, offset = 0x4, fixed_abs, tag = 'smem constant byte address 0x4 - core index']
  #allocation1 [shape = 'u32[144,128]{1,0:T(1,128)}', space=vmem, size = 0x12000, scoped, tag = 'internal scratch']
  #allocation2 [shape = 'f32[1,1]{1,0:T(1,128)S(6)}', space=smem, size = 0x200, scoped, tag = 'scoped memory for tpu_custom_call.1']
  %s0 = inlined_call_operand.hbm [shape: bf16[16,32], index: 0, kind: input, shape index: {}]
  %s1 = inlined_call_operand.hbm [shape: bf16[32,256], index: 1, kind: input, shape index: {}]
  %s2 = inlined_call_operand.vmem [shape: f32[1,256], index: 2, kind: input, shape index: {}]
  %s3 = inlined_call_operand.hbm [shape: bf16[256,128], index: 3, kind: input, shape index: {}]
  %s4 = inlined_call_operand.vmem [shape: f32[1,128], index: 4, kind: input, shape index: {}]
  %s5 = inlined_call_operand.hbm [shape: bf16[128,128], index: 5, kind: input, shape index: {}]
  %s6 = inlined_call_operand.vmem [shape: f32[1,128], index: 6, kind: input, shape index: {}]
  %s7 = inlined_call_operand.hbm [shape: bf16[128,128], index: 7, kind: input, shape index: {}]
  %s8 = inlined_call_operand.vmem [shape: f32[1,128], index: 8, kind: input, shape index: {}]
  %s9 = inlined_call_operand.<no memory space> [shape: f32[1,1], index: 9, kind: input, shape index: {}]
  %s10 = inlined_call_operand.hbm [shape: bf16[16,128], index: 10, kind: output, shape index: {}]
  %s11 = sld [smem:[#allocation0]]
  $region70: #{tpu_custom_call.1} parent=0
    _
  %s13 = ssub.s32 1, %s11
  %s14 = scalar_select 0, %s13, %s11
  %15 = sst [smem:[#allocation2]] %s9
  $region1: #{tpu_custom_call.1} parent=0
    #allocation3 [shape = 'u8[4096]{0}', space=vmem, size = 0x1000, scoped, tag = 'input window, operand 0, single buffered']
    #allocation4 [shape = 's32[1]{0}', space=sflag, size = 0x4, scoped, tag = 'scoped memory for tpu_custom_call.1']
    #allocation5 [shape = 's32[1]{0}', space=sflag, size = 0x4, scoped, tag = 'scoped memory for tpu_custom_call.1']
    #allocation6 [shape = 'u8[16384]{0}', space=vmem, size = 0x4000, scoped, tag = 'input window, operand 1, single buffered']
    #allocation7 [shape = 's32[1]{0}', space=sflag, size = 0x4, scoped, tag = 'scoped memory for tpu_custom_call.1']
    #allocation8 [shape = 'u8[65536]{0}', space=vmem, size = 0x10000, scoped, tag = 'input window, operand 3, single buffered']
    #allocation9 [shape = 'u8[32768]{0}', space=vmem, size = 0x8000, scoped, tag = 'input window, operand 5, single buffered']
    #allocation10 [shape = 's32[1]{0}', space=sflag, size = 0x4, scoped, tag = 'scoped memory for tpu_custom_call.1']
    #allocation11 [shape = 'u8[32768]{0}', space=vmem, size = 0x8000, scoped, tag = 'input window, operand 7, single buffered']
    #allocation12 [shape = 'u8[4096]{0}', space=vmem, size = 0x1000, scoped, tag = 'output window, operand 0, single buffered']
    %16 = vsyncpa [#allocation4], 0
    %17 = vsyncpa [#allocation7], 0
    %18 = vsyncpa [#allocation10], 0
    %19 = vsyncpa [#allocation5], 0
    // Predicated region
    $region2: #{tpu_custom_call.1} parent=1 // pred_check
      _
    $region3: #{tpu_custom_call.1} parent=1 // pred_check_branch
      %21 = sbr.rel (0) target = $region5
    $region4: #{tpu_custom_call.1} parent=1 // pred_region
      %s23 = ssub.s32 128, 128
      %24 = vsyncadd [#allocation4], %s23
      %s25 = sshll.u32 [#allocation3], 4
      %s26 = int_to_ptr.vmem [resolvable:$true] %s25
      %31 = dma.hbm_to_vmem [thread:$0]  %s0, 128, %s26, [#allocation4], 64, 64, 4
    $region5: #{tpu_custom_call.1} parent=1 // pred_fallthru
      _
    // Predicated region
    $region6: #{tpu_custom_call.1} parent=1 // pred_check
      _
    $region7: #{tpu_custom_call.1} parent=1 // pred_check_branch
      %33 = sbr.rel (0) target = $region9
    $region8: #{tpu_custom_call.1} parent=1 // pred_region
      %s35 = ssub.s32 512, 512
      %36 = vsyncadd [#allocation7], %s35
      %s37 = sshll.u32 [#allocation6], 4
      %s38 = int_to_ptr.vmem [resolvable:$true] %s37
      %43 = dma.hbm_to_vmem [thread:$0]  %s1, 512, %s38, [#allocation7], 128, 128, 8
    $region9: #{tpu_custom_call.1} parent=1 // pred_fallthru
      _
    // Predicated region
    $region10: #{tpu_custom_call.1} parent=1 // pred_check
      _
    $region11: #{tpu_custom_call.1} parent=1 // pred_check_branch
      %45 = sbr.rel (0) target = $region13
    $region12: #{tpu_custom_call.1} parent=1 // pred_region
      _
    $region13: #{tpu_custom_call.1} parent=1 // pred_fallthru
      _
    // Predicated region
    $region14: #{tpu_custom_call.1} parent=1 // pred_check
      _
    $region15: #{tpu_custom_call.1} parent=1 // pred_check_branch
      %47 = sbr.rel (0) target = $region17
    $region16: #{tpu_custom_call.1} parent=1 // pred_region
      %s49 = ssub.s32 2048, 2048
      %50 = vsyncadd [#allocation7], %s49
      %s51 = sshll.u32 [#allocation8], 4
      %s52 = int_to_ptr.vmem [resolvable:$true] %s51
      %57 = dma.hbm_to_vmem [thread:$0]  %s3, 2048, %s52, [#allocation7], 64, 64, 4
    $region17: #{tpu_custom_call.1} parent=1 // pred_fallthru
      _
    // Predicated region
    $region18: #{tpu_custom_call.1} parent=1 // pred_check
      _
    $region19: #{tpu_custom_call.1} parent=1 // pred_check_branch
      %59 = sbr.rel (0) target = $region21
    $region20: #{tpu_custom_call.1} parent=1 // pred_region
      _
    $region21: #{tpu_custom_call.1} parent=1 // pred_fallthru
      _
    // Predicated region
    $region22: #{tpu_custom_call.1} parent=1 // pred_check
      _
    $region23: #{tpu_custom_call.1} parent=1 // pred_check_branch
      %61 = sbr.rel (0) target = $region25
    $region24: #{tpu_custom_call.1} parent=1 // pred_region
      %s63 = ssub.s32 1024, 1024
      %64 = vsyncadd [#allocation10], %s63
      %s65 = sshll.u32 [#allocation9], 4
      %s66 = int_to_ptr.vmem [resolvable:$true] %s65
      %71 = dma.hbm_to_vmem [thread:$0]  %s5, 1024, %s66, [#allocation10], 64, 64, 4
    $region25: #{tpu_custom_call.1} parent=1 // pred_fallthru
      _
    // Predicated region
    $region26: #{tpu_custom_call.1} parent=1 // pred_check
      _
    $region27: #{tpu_custom_call.1} parent=1 // pred_check_branch
      %73 = sbr.rel (0) target = $region29
    $region28: #{tpu_custom_call.1} parent=1 // pred_region
      _
    $region29: #{tpu_custom_call.1} parent=1 // pred_fallthru
      _
    // Predicated region
    $region30: #{tpu_custom_call.1} parent=1 // pred_check
      _
    $region31: #{tpu_custom_call.1} parent=1 // pred_check_branch
      %75 = sbr.rel (0) target = $region33
    $region32: #{tpu_custom_call.1} parent=1 // pred_region
      %s77 = ssub.s32 1024, 1024
      %78 = vsyncadd [#allocation10], %s77
      %s79 = sshll.u32 [#allocation11], 4
      %s80 = int_to_ptr.vmem [resolvable:$true] %s79
      %85 = dma.hbm_to_vmem [thread:$0]  %s7, 1024, %s80, [#allocation10], 64, 64, 4
    $region33: #{tpu_custom_call.1} parent=1 // pred_fallthru
      _
    // Predicated region
    $region34: #{tpu_custom_call.1} parent=1 // pred_check
      _
    $region35: #{tpu_custom_call.1} parent=1 // pred_check_branch
      %87 = sbr.rel (0) target = $region37
    $region36: #{tpu_custom_call.1} parent=1 // pred_region
      _
    $region37: #{tpu_custom_call.1} parent=1 // pred_fallthru
      _
    // Predicated region
    $region38: #{tpu_custom_call.1} parent=1 // pred_check
      _
    $region39: #{tpu_custom_call.1} parent=1 // pred_check_branch
      %89 = sbr.rel (0) target = $region41
    $region40: #{tpu_custom_call.1} parent=1 // pred_region
      _
    $region41: #{tpu_custom_call.1} parent=1 // pred_fallthru
      _
    // Predicated region
    $region42: #{tpu_custom_call.1} parent=1 // pred_check
      _
    $region43: #{tpu_custom_call.1} parent=1 // pred_check_branch
      %91 = sbr.rel (0) target = $region45
    $region44: #{tpu_custom_call.1} parent=1 // pred_region
      %92 = dma.done [#allocation4], 128
    $region45: #{tpu_custom_call.1} parent=1 // pred_fallthru
      _
    // Predicated region
    $region46: #{tpu_custom_call.1} parent=1 // pred_check
      _
    $region47: #{tpu_custom_call.1} parent=1 // pred_check_branch
      %94 = sbr.rel (0) target = $region49
    $region48: #{tpu_custom_call.1} parent=1 // pred_region
      %95 = dma.done [#allocation7], 512
    $region49: #{tpu_custom_call.1} parent=1 // pred_fallthru
      _
    // Predicated region
    $region50: #{tpu_custom_call.1} parent=1 // pred_check
      _
    $region51: #{tpu_custom_call.1} parent=1 // pred_check_branch
      %97 = sbr.rel (0) target = $region53
    $region52: #{tpu_custom_call.1} parent=1 // pred_region
      %98 = dma.done [#allocation7], 2048
    $region53: #{tpu_custom_call.1} parent=1 // pred_fallthru
      _
    // Predicated region
    $region54: #{tpu_custom_call.1} parent=1 // pred_check
      _
    $region55: #{tpu_custom_call.1} parent=1 // pred_check_branch
      %100 = sbr.rel (0) target = $region57
    $region56: #{tpu_custom_call.1} parent=1 // pred_region
      %101 = dma.done [#allocation10], 1024
    $region57: #{tpu_custom_call.1} parent=1 // pred_fallthru
      _
    // Predicated region
    $region58: #{tpu_custom_call.1} parent=1 // pred_check
      _
    $region59: #{tpu_custom_call.1} parent=1 // pred_check_branch
      %103 = sbr.rel (0) target = $region61
    $region60: #{tpu_custom_call.1} parent=1 // pred_region
      %104 = dma.done [#allocation10], 1024
    $region61: #{tpu_custom_call.1} parent=1 // pred_fallthru
      _
    %v106 = vld [vmem:[#allocation3] sm:$0xf]
    %v107 = vld [vmem:[#allocation3 + $0x4] sm:$0xf]
    %v108 = vld [vmem:[#allocation6] sm:$0xff]
    %v109 = vld [vmem:[#allocation6 + $0x8] sm:$0xff]
    %v110 = vld [vmem:[#allocation6 + $0x10] sm:$0xff]
    %v111 = vld [vmem:[#allocation6 + $0x18] sm:$0xff]
    %v112 = vld [vmem:[%s2] sm:$0x3]
    %v114 = vlaneseq
    %v115 = vshrl.u32 %v114, 7
    %v116 = vsub.s32 0, %v115
    %v117 = vrot.slane %v112, %v116
    %v118 = vlaneseq
    %v119 = vshrl.u32 %v118, 7
    %v120 = vsub.s32 1, %v119
    %v121 = vrot.slane %v112, %v120
    %v126 = vunpack.c.l.b16 %v106
    %v127 = vunpack.c.l.b16 %v107
    %v128 = vpack.c.b16 %v127, %v126
    %v133 = vunpack.c.l.b16 %v108
    %v134 = vunpack.c.h.b16 %v108
    %v135 = vunpack.c.l.b16 %v109
    %v136 = vunpack.c.h.b16 %v109
    %v137 = vunpack.c.l.b16 %v110
    %v138 = vunpack.c.h.b16 %v110
    %v139 = vunpack.c.l.b16 %v111
    %v140 = vunpack.c.h.b16 %v111
    %v141 = vpack.c.b16 %v135, %v133
    %v142 = vpack.c.b16 %v136, %v134
    %v143 = vpack.c.b16 %v139, %v137
    %v144 = vpack.c.b16 %v140, %v138
    %vm149 = vcmask 261120
    %v151 = vsel %vm149, %v128, 0
    %153 = vmatprep.subr.bf16.mxu0 0
    %154 = vmatpush1.bf16.msra.mxu0 0
    %155 = vmatprep.subr.bf16.mxu0 0
    %156 = vmatpush1.bf16.msra.mxu0 0
    %157 = vmatprep.subr.bf16.mxu0 0
    %158 = vmatpush1.bf16.msra.mxu0 0
    %159 = vmatprep.subr.bf16.mxu0 0
    %160 = vmatpush1.bf16.msra.mxu0 0
    %161 = vmatprep.subr.bf16.mxu0 0
    %162 = vmatpush1.bf16.msra.mxu0 0
    %163 = vmatprep.subr.bf16.mxu0 0
    %164 = vmatpush1.bf16.msra.mxu0 0
    %165 = vmatprep.subr.bf16.mxu0 %v144
    %166 = vmatpush1.bf16.msra.mxu0 %v143
    %167 = vmatprep.subr.bf16.mxu0 %v142
    %168 = vmatpush1.bf16.msra.mxu0 %v141
    %169 = vmatprep.subr.bf16.mxu0 0
    %170 = vmatpush2.bf16.msra.mxu0 0
    %171 = vmatprep.subr.bf16.mxu0 0
    %172 = vmatpush2.bf16.msra.mxu0 0
    %173 = vmatprep.subr.bf16.mxu0 0
    %174 = vmatpush2.bf16.msra.mxu0 0
    %175 = vmatprep.subr.bf16.mxu0 0
    %176 = vmatpush2.bf16.msra.mxu0 0
    %177 = vmatprep.subr.bf16.mxu0 0
    %178 = vmatpush2.bf16.msra.mxu0 0
    %179 = vmatprep.subr.bf16.mxu0 0
    %180 = vmatpush2.bf16.msra.mxu0 0
    %181 = vmatprep.subr.bf16.mxu0 0
    %182 = vmatpush2.bf16.msra.mxu0 0
    %183 = vmatprep.subr.bf16.mxu0 0
    %184 = vmatpush2.bf16.msra.mxu0 0
    %185 = vmatprep.mubr.bf16.mxu0 0
    %186 = vmatmul.mubr.bf16.gmra.mxu0 %v151
    %v187 = vpop.f32.mrf.mxu0
    %v188 = vadd.f32 %v117, %v187
    %v189 = vpop.f32.mrf.mxu0
    %v190 = vadd.f32 %v121, %v189
    %v191 = vpop.f32.mrf.mxu0
    %v192 = vadd.f32 %v117, %v191
    %v193 = vpop.f32.mrf.mxu0
    %v194 = vadd.f32 %v121, %v193
    %195 = vdwg.mxu0
    %v196 = vmax.f32 %v188, 0.0
    %v197 = vmax.f32 %v190, 0.0
    %v198 = vmax.f32 %v192, 0.0
    %v199 = vmax.f32 %v194, 0.0
    %v200 = vpack.c.bf16 %v198, %v196
    %v201 = vpack.c.bf16 %v199, %v197
    %v202 = vld [vmem:[#allocation8] sm:$0xf]
    %v203 = vld [vmem:[#allocation8 + $0x4] sm:$0xf]
    %v204 = vld [vmem:[#allocation8 + $0x8] sm:$0xf]
    %v205 = vld [vmem:[#allocation8 + $0xc] sm:$0xf]
    %v206 = vld [vmem:[#allocation8 + $0x10] sm:$0xf]
    %v207 = vld [vmem:[#allocation8 + $0x14] sm:$0xf]
    %v208 = vld [vmem:[#allocation8 + $0x18] sm:$0xf]
    %v209 = vld [vmem:[#allocation8 + $0x1c] sm:$0xf]
    %v210 = vld [vmem:[#allocation8 + $0x20] sm:$0xf]
    %v211 = vld [vmem:[#allocation8 + $0x24] sm:$0xf]
    %v212 = vld [vmem:[#allocation8 + $0x28] sm:$0xf]
    %v213 = vld [vmem:[#allocation8 + $0x2c] sm:$0xf]
    %v214 = vld [vmem:[#allocation8 + $0x30] sm:$0xf]
    %v215 = vld [vmem:[#allocation8 + $0x34] sm:$0xf]
    %v216 = vld [vmem:[#allocation8 + $0x38] sm:$0xf]
    %v217 = vld [vmem:[#allocation8 + $0x3c] sm:$0xf]
    %v218 = vld [vmem:[#allocation8 + $0x40] sm:$0xf]
    %v219 = vld [vmem:[#allocation8 + $0x44] sm:$0xf]
    %v220 = vld [vmem:[#allocation8 + $0x48] sm:$0xf]
    %v221 = vld [vmem:[#allocation8 + $0x4c] sm:$0xf]
    %v222 = vld [vmem:[#allocation8 + $0x50] sm:$0xf]
    %v223 = vld [vmem:[#allocation8 + $0x54] sm:$0xf]
    %v224 = vld [vmem:[#allocation8 + $0x58] sm:$0xf]
    %v225 = vld [vmem:[#allocation8 + $0x5c] sm:$0xf]
    %v226 = vld [vmem:[#allocation8 + $0x60] sm:$0xf]
    %v227 = vld [vmem:[#allocation8 + $0x64] sm:$0xf]
    %v228 = vld [vmem:[#allocation8 + $0x68] sm:$0xf]
    %v229 = vld [vmem:[#allocation8 + $0x6c] sm:$0xf]
    %v230 = vld [vmem:[#allocation8 + $0x70] sm:$0xf]
    %v231 = vld [vmem:[#allocation8 + $0x74] sm:$0xf]
    %v232 = vld [vmem:[#allocation8 + $0x78] sm:$0xf]
    %v233 = vld [vmem:[#allocation8 + $0x7c] sm:$0xf]
    %v234 = vld [vmem:[%s4] sm:$0x1]
    %v236 = vlaneseq
    %v237 = vshrl.u32 %v236, 7
    %v238 = vsub.s32 0, %v237
    %v239 = vrot.slane %v234, %v238
    %v273 = vunpack.c.l.b16 %v202
    %v274 = vunpack.c.l.b16 %v203
    %v275 = vunpack.c.l.b16 %v204
    %v276 = vunpack.c.l.b16 %v205
    %v277 = vunpack.c.l.b16 %v206
    %v278 = vunpack.c.l.b16 %v207
    %v279 = vunpack.c.l.b16 %v208
    %v280 = vunpack.c.l.b16 %v209
    %v281 = vunpack.c.l.b16 %v210
    %v282 = vunpack.c.l.b16 %v211
    %v283 = vunpack.c.l.b16 %v212
    %v284 = vunpack.c.l.b16 %v213
    %v285 = vunpack.c.l.b16 %v214
    %v286 = vunpack.c.l.b16 %v215
    %v287 = vunpack.c.l.b16 %v216
    %v288 = vunpack.c.l.b16 %v217
    %v289 = vunpack.c.l.b16 %v218
    %v290 = vunpack.c.l.b16 %v219
    %v291 = vunpack.c.l.b16 %v220
    %v292 = vunpack.c.l.b16 %v221
    %v293 = vunpack.c.l.b16 %v222
    %v294 = vunpack.c.l.b16 %v223
    %v295 = vunpack.c.l.b16 %v224
    %v296 = vunpack.c.l.b16 %v225
    %v297 = vunpack.c.l.b16 %v226
    %v298 = vunpack.c.l.b16 %v227
    %v299 = vunpack.c.l.b16 %v228
    %v300 = vunpack.c.l.b16 %v229
    %v301 = vunpack.c.l.b16 %v230
    %v302 = vunpack.c.l.b16 %v231
    %v303 = vunpack.c.l.b16 %v232
    %v304 = vunpack.c.l.b16 %v233
    %v305 = vpack.c.b16 %v274, %v273
    %v306 = vpack.c.b16 %v276, %v275
    %v307 = vpack.c.b16 %v278, %v277
    %v308 = vpack.c.b16 %v280, %v279
    %v309 = vpack.c.b16 %v282, %v281
    %v310 = vpack.c.b16 %v284, %v283
    %v311 = vpack.c.b16 %v286, %v285
    %v312 = vpack.c.b16 %v288, %v287
    %v313 = vpack.c.b16 %v290, %v289
    %v314 = vpack.c.b16 %v292, %v291
    %v315 = vpack.c.b16 %v294, %v293
    %v316 = vpack.c.b16 %v296, %v295
    %v317 = vpack.c.b16 %v298, %v297
    %v318 = vpack.c.b16 %v300, %v299
    %v319 = vpack.c.b16 %v302, %v301
    %v320 = vpack.c.b16 %v304, %v303
    %337 = vmatprep.subr.bf16.mxu0 0
    %338 = vmatpush1.bf16.msra.mxu0 %v312
    %339 = vmatprep.subr.bf16.mxu0 0
    %340 = vmatpush1.bf16.msra.mxu0 %v311
    %341 = vmatprep.subr.bf16.mxu0 0
    %342 = vmatpush1.bf16.msra.mxu0 %v310
    %343 = vmatprep.subr.bf16.mxu0 0
    %344 = vmatpush1.bf16.msra.mxu0 %v309
    %345 = vmatprep.subr.bf16.mxu0 0
    %346 = vmatpush1.bf16.msra.mxu0 %v308
    %347 = vmatprep.subr.bf16.mxu0 0
    %348 = vmatpush1.bf16.msra.mxu0 %v307
    %349 = vmatprep.subr.bf16.mxu0 0
    %350 = vmatpush1.bf16.msra.mxu0 %v306
    %351 = vmatprep.subr.bf16.mxu0 0
    %352 = vmatpush1.bf16.msra.mxu0 %v305
    %353 = vmatprep.subr.bf16.mxu0 0
    %354 = vmatpush2.bf16.msra.mxu0 %v320
    %355 = vmatprep.subr.bf16.mxu0 0
    %356 = vmatpush2.bf16.msra.mxu0 %v319
    %357 = vmatprep.subr.bf16.mxu0 0
    %358 = vmatpush2.bf16.msra.mxu0 %v318
    %359 = vmatprep.subr.bf16.mxu0 0
    %360 = vmatpush2.bf16.msra.mxu0 %v317
    %361 = vmatprep.subr.bf16.mxu0 0
    %362 = vmatpush2.bf16.msra.mxu0 %v316
    %363 = vmatprep.subr.bf16.mxu0 0
    %364 = vmatpush2.bf16.msra.mxu0 %v315
    %365 = vmatprep.subr.bf16.mxu0 0
    %366 = vmatpush2.bf16.msra.mxu0 %v314
    %367 = vmatprep.subr.bf16.mxu0 0
    %368 = vmatpush2.bf16.msra.mxu0 %v313
    %369 = vmatprep.mubr.bf16.mxu0 %v201
    %370 = vmatmul.mubr.bf16.gmra.mxu0 %v200
    %v371 = vpop.f32.mrf.mxu0
    %v372 = vadd.f32 %v239, %v371
    %v373 = vpop.f32.mrf.mxu0
    %v374 = vpop.f32.mrf.mxu0
    %v375 = vadd.f32 %v239, %v374
    %v376 = vpop.f32.mrf.mxu0
    %377 = vdwg.mxu0
    %v378 = vmax.f32 %v372, 0.0
    %v379 = vmax.f32 %v375, 0.0
    %v380 = vpack.c.bf16 %v379, %v378
    %v381 = vld [vmem:[#allocation9] sm:$0xf]
    %v382 = vld [vmem:[#allocation9 + $0x4] sm:$0xf]
    %v383 = vld [vmem:[#allocation9 + $0x8] sm:$0xf]
    %v384 = vld [vmem:[#allocation9 + $0xc] sm:$0xf]
    %v385 = vld [vmem:[#allocation9 + $0x10] sm:$0xf]
    %v386 = vld [vmem:[#allocation9 + $0x14] sm:$0xf]
    %v387 = vld [vmem:[#allocation9 + $0x18] sm:$0xf]
    %v388 = vld [vmem:[#allocation9 + $0x1c] sm:$0xf]
    %v389 = vld [vmem:[#allocation9 + $0x20] sm:$0xf]
    %v390 = vld [vmem:[#allocation9 + $0x24] sm:$0xf]
    %v391 = vld [vmem:[#allocation9 + $0x28] sm:$0xf]
    %v392 = vld [vmem:[#allocation9 + $0x2c] sm:$0xf]
    %v393 = vld [vmem:[#allocation9 + $0x30] sm:$0xf]
    %v394 = vld [vmem:[#allocation9 + $0x34] sm:$0xf]
    %v395 = vld [vmem:[#allocation9 + $0x38] sm:$0xf]
    %v396 = vld [vmem:[#allocation9 + $0x3c] sm:$0xf]
    %v397 = vld [vmem:[%s6] sm:$0x1]
    %v399 = vlaneseq
    %v400 = vshrl.u32 %v399, 7
    %v401 = vsub.s32 0, %v400
    %v402 = vrot.slane %v397, %v401
    %v420 = vunpack.c.l.b16 %v381
    %v421 = vunpack.c.l.b16 %v382
    %v422 = vunpack.c.l.b16 %v383
    %v423 = vunpack.c.l.b16 %v384
    %v424 = vunpack.c.l.b16 %v385
    %v425 = vunpack.c.l.b16 %v386
    %v426 = vunpack.c.l.b16 %v387
    %v427 = vunpack.c.l.b16 %v388
    %v428 = vunpack.c.l.b16 %v389
    %v429 = vunpack.c.l.b16 %v390
    %v430 = vunpack.c.l.b16 %v391
    %v431 = vunpack.c.l.b16 %v392
    %v432 = vunpack.c.l.b16 %v393
    %v433 = vunpack.c.l.b16 %v394
    %v434 = vunpack.c.l.b16 %v395
    %v435 = vunpack.c.l.b16 %v396
    %v436 = vpack.c.b16 %v421, %v420
    %v437 = vpack.c.b16 %v423, %v422
    %v438 = vpack.c.b16 %v425, %v424
    %v439 = vpack.c.b16 %v427, %v426
    %v440 = vpack.c.b16 %v429, %v428
    %v441 = vpack.c.b16 %v431, %v430
    %v442 = vpack.c.b16 %v433, %v432
    %v443 = vpack.c.b16 %v435, %v434
    %452 = vmatprep.subr.bf16.mxu0 0
    %453 = vmatpush1.bf16.msra.mxu0 %v443
    %454 = vmatprep.subr.bf16.mxu0 0
    %455 = vmatpush1.bf16.msra.mxu0 %v442
    %456 = vmatprep.subr.bf16.mxu0 0
    %457 = vmatpush1.bf16.msra.mxu0 %v441
    %458 = vmatprep.subr.bf16.mxu0 0
    %459 = vmatpush1.bf16.msra.mxu0 %v440
    %460 = vmatprep.subr.bf16.mxu0 0
    %461 = vmatpush1.bf16.msra.mxu0 %v439
    %462 = vmatprep.subr.bf16.mxu0 0
    %463 = vmatpush1.bf16.msra.mxu0 %v438
    %464 = vmatprep.subr.bf16.mxu0 0
    %465 = vmatpush1.bf16.msra.mxu0 %v437
    %466 = vmatprep.subr.bf16.mxu0 0
    %467 = vmatpush1.bf16.msra.mxu0 %v436
    %468 = vmatprep.subr.bf16.mxu0 0
    %469 = vmatpush2.bf16.msra.mxu0 0
    %470 = vmatprep.subr.bf16.mxu0 0
    %471 = vmatpush2.bf16.msra.mxu0 0
    %472 = vmatprep.subr.bf16.mxu0 0
    %473 = vmatpush2.bf16.msra.mxu0 0
    %474 = vmatprep.subr.bf16.mxu0 0
    %475 = vmatpush2.bf16.msra.mxu0 0
    %476 = vmatprep.subr.bf16.mxu0 0
    %477 = vmatpush2.bf16.msra.mxu0 0
    %478 = vmatprep.subr.bf16.mxu0 0
    %479 = vmatpush2.bf16.msra.mxu0 0
    %480 = vmatprep.subr.bf16.mxu0 0
    %481 = vmatpush2.bf16.msra.mxu0 0
    %482 = vmatprep.subr.bf16.mxu0 0
    %483 = vmatpush2.bf16.msra.mxu0 0
    %484 = vmatprep.mubr.bf16.mxu0 0
    %485 = vmatmul.mubr.bf16.gmra.mxu0 %v380
    %v486 = vpop.f32.mrf.mxu0
    %v487 = vadd.f32 %v402, %v486
    %v488 = vpop.f32.mrf.mxu0
    %v489 = vpop.f32.mrf.mxu0
    %v490 = vadd.f32 %v402, %v489
    %v491 = vpop.f32.mrf.mxu0
    %492 = vdwg.mxu0
    %v493 = vmax.f32 %v487, 0.0
    %v494 = vmax.f32 %v490, 0.0
    %v495 = vpack.c.bf16 %v494, %v493
    %v496 = vld [vmem:[#allocation11] sm:$0xf]
    %v497 = vld [vmem:[#allocation11 + $0x4] sm:$0xf]
    %v498 = vld [vmem:[#allocation11 + $0x8] sm:$0xf]
    %v499 = vld [vmem:[#allocation11 + $0xc] sm:$0xf]
    %v500 = vld [vmem:[#allocation11 + $0x10] sm:$0xf]
    %v501 = vld [vmem:[#allocation11 + $0x14] sm:$0xf]
    %v502 = vld [vmem:[#allocation11 + $0x18] sm:$0xf]
    %v503 = vld [vmem:[#allocation11 + $0x1c] sm:$0xf]
    %v504 = vld [vmem:[#allocation11 + $0x20] sm:$0xf]
    %v505 = vld [vmem:[#allocation11 + $0x24] sm:$0xf]
    %v506 = vld [vmem:[#allocation11 + $0x28] sm:$0xf]
    %v507 = vld [vmem:[#allocation11 + $0x2c] sm:$0xf]
    %v508 = vld [vmem:[#allocation11 + $0x30] sm:$0xf]
    %v509 = vld [vmem:[#allocation11 + $0x34] sm:$0xf]
    %v510 = vld [vmem:[#allocation11 + $0x38] sm:$0xf]
    %v511 = vld [vmem:[#allocation11 + $0x3c] sm:$0xf]
    %v512 = vld [vmem:[%s8] sm:$0x1]
    %v514 = vlaneseq
    %v515 = vshrl.u32 %v514, 7
    %v516 = vsub.s32 0, %v515
    %v517 = vrot.slane %v512, %v516
    %v535 = vunpack.c.l.b16 %v496
    %v536 = vunpack.c.l.b16 %v497
    %v537 = vunpack.c.l.b16 %v498
    %v538 = vunpack.c.l.b16 %v499
    %v539 = vunpack.c.l.b16 %v500
    %v540 = vunpack.c.l.b16 %v501
    %v541 = vunpack.c.l.b16 %v502
    %v542 = vunpack.c.l.b16 %v503
    %v543 = vunpack.c.l.b16 %v504
    %v544 = vunpack.c.l.b16 %v505
    %v545 = vunpack.c.l.b16 %v506
    %v546 = vunpack.c.l.b16 %v507
    %v547 = vunpack.c.l.b16 %v508
    %v548 = vunpack.c.l.b16 %v509
    %v549 = vunpack.c.l.b16 %v510
    %v550 = vunpack.c.l.b16 %v511
    %v551 = vpack.c.b16 %v536, %v535
    %v552 = vpack.c.b16 %v538, %v537
    %v553 = vpack.c.b16 %v540, %v539
    %v554 = vpack.c.b16 %v542, %v541
    %v555 = vpack.c.b16 %v544, %v543
    %v556 = vpack.c.b16 %v546, %v545
    %v557 = vpack.c.b16 %v548, %v547
    %v558 = vpack.c.b16 %v550, %v549
    %567 = vmatprep.subr.bf16.mxu0 0
    %568 = vmatpush1.bf16.msra.mxu0 %v558
    %569 = vmatprep.subr.bf16.mxu0 0
    %570 = vmatpush1.bf16.msra.mxu0 %v557
    %571 = vmatprep.subr.bf16.mxu0 0
    %572 = vmatpush1.bf16.msra.mxu0 %v556
    %573 = vmatprep.subr.bf16.mxu0 0
    %574 = vmatpush1.bf16.msra.mxu0 %v555
    %575 = vmatprep.subr.bf16.mxu0 0
    %576 = vmatpush1.bf16.msra.mxu0 %v554
    %577 = vmatprep.subr.bf16.mxu0 0
    %578 = vmatpush1.bf16.msra.mxu0 %v553
    %579 = vmatprep.subr.bf16.mxu0 0
    %580 = vmatpush1.bf16.msra.mxu0 %v552
    %581 = vmatprep.subr.bf16.mxu0 0
    %582 = vmatpush1.bf16.msra.mxu0 %v551
    %583 = vmatprep.subr.bf16.mxu0 0
    %584 = vmatpush2.bf16.msra.mxu0 0
    %585 = vmatprep.subr.bf16.mxu0 0
    %586 = vmatpush2.bf16.msra.mxu0 0
    %587 = vmatprep.subr.bf16.mxu0 0
    %588 = vmatpush2.bf16.msra.mxu0 0
    %589 = vmatprep.subr.bf16.mxu0 0
    %590 = vmatpush2.bf16.msra.mxu0 0
    %591 = vmatprep.subr.bf16.mxu0 0
    %592 = vmatpush2.bf16.msra.mxu0 0
    %593 = vmatprep.subr.bf16.mxu0 0
    %594 = vmatpush2.bf16.msra.mxu0 0
    %595 = vmatprep.subr.bf16.mxu0 0
    %596 = vmatpush2.bf16.msra.mxu0 0
    %597 = vmatprep.subr.bf16.mxu0 0
    %598 = vmatpush2.bf16.msra.mxu0 0
    %599 = vmatprep.mubr.bf16.mxu0 0
    %600 = vmatmul.mubr.bf16.gmra.mxu0 %v495
    %v601 = vpop.f32.mrf.mxu0
    %v602 = vadd.f32 %v517, %v601
    %v603 = vpop.f32.mrf.mxu0
    %v604 = vpop.f32.mrf.mxu0
    %v605 = vadd.f32 %v517, %v604
    %v606 = vpop.f32.mrf.mxu0
    %607 = vdwg.mxu0
    %v608 = vtanh.pop %v602
    %v609 = vtanh.pop %v605
    %s610 = sld [smem:[#allocation2]]
    %v611 = vstv %s610
    %v612 = vmul.f32 %v608, %v611
    %v613 = vmul.f32 %v609, %v611
    %v614 = vpack.c.bf16 %v613, %v612
    %v616 = vunpack.c.l.b16 %v614
    %v617 = vunpack.c.h.b16 %v614
    %v618 = vpack.c.b16 %v616, %v616
    %v619 = vpack.c.b16 %v617, %v617
    %622 = vst [vmem:[#allocation12] sm:$0xf] %v618
    %623 = vst [vmem:[#allocation12 + $0x4] sm:$0xf] %v619
    // Predicated region
    $region62: #{tpu_custom_call.1} parent=1 // pred_check
      _
    $region63: #{tpu_custom_call.1} parent=1 // pred_check_branch
      %625 = sbr.rel (0) target = $region65
    $region64: #{tpu_custom_call.1} parent=1 // pred_region
      %s627 = ssub.s32 128, 128
      %628 = vsyncadd [#allocation5], %s627
      %s629 = sshll.u32 [#allocation12], 4
      %s630 = int_to_ptr.vmem [resolvable:$true] %s629
      %635 = dma.vmem_to_hbm [thread:$0]  %s630, 128, %s10, [#allocation5], 64, 64, 4
    $region65: #{tpu_custom_call.1} parent=1 // pred_fallthru
      _
    // Predicated region
    $region66: #{tpu_custom_call.1} parent=1 // pred_check
      _
    $region67: #{tpu_custom_call.1} parent=1 // pred_check_branch
      %637 = sbr.rel (0) target = $region69
    $region68: #{tpu_custom_call.1} parent=1 // pred_region
      %638 = dma.done [#allocation5], 128
    $region69: #{tpu_custom_call.1} parent=1 // pred_fallthru
      _
    %639 = vsyncpa [#allocation4], 1
    %640 = vsyncpa [#allocation7], 1
    %641 = vsyncpa [#allocation10], 1
    %642 = vsyncpa [#allocation5], 1

</llo_original>
